<compile_context>
chip_gen: v6e
topology: v6e:2x2x1
jax: 0.10.0
libtpu: 0.0.40
codegen_flags: <defaults>
</compile_context>

<pallas_src>
import functools
import math

import jax
import jax.numpy as jnp
from jax.experimental import pallas as pl
from jax.experimental.pallas import tpu as pltpu


_SQRT_2_OVER_PI = math.sqrt(2.0 / math.pi)
_GELU_C = 0.044715 * _SQRT_2_OVER_PI  # folded constant: saves one VPU multiply


def mlp_kernel(x_ref, wfc_ref, bfc_ref, wpj_ref, bpj_ref, o_ref, acc_ref):
    """One (token-tile, hidden-tile) grid step of the fused MLP."""
    h_idx = pl.program_id(1)

    @pl.when(h_idx == 0)
    def _init():
        # Fold the c_proj bias into the accumulator init (removes the
        # finalize-time add; same store cost as zeroing).
        acc_ref[...] = jnp.broadcast_to(bpj_ref[...], acc_ref.shape)

    # c_fc partial (MXU): (tm, Cp) @ (Cp, th) -> f32, + bias slice.
    h = jnp.dot(x_ref[...], wfc_ref[...], preferred_element_type=jnp.float32)
    h = h + bfc_ref[...]

    # tanh-approx GELU, kept in f32 (elementwise over hidden => exact under
    # hidden tiling; tanh goes to the EUP slot, essentially free vs the MXU).
    inner = h * (_SQRT_2_OVER_PI + _GELU_C * (h * h))
    h = 0.5 * h * (1.0 + jnp.tanh(inner))

    # c_proj partial (MXU): (tm, th) @ (th, Cp), f32 accumulate in VMEM scratch.
    acc_ref[...] += jnp.dot(h.astype(wpj_ref.dtype), wpj_ref[...],
                            preferred_element_type=jnp.float32)

    @pl.when(h_idx == pl.num_programs(1) - 1)
    def _finalize():
        o_ref[...] = acc_ref[...].astype(o_ref.dtype)


def _round_up(n, m):
    return ((n + m - 1) // m) * m


@functools.partial(jax.jit, static_argnames=("tm", "th", "compute_dtype"))
def mlp_pallas(x, w_fc, b_fc, w_proj, b_proj, *, tm=256, th=512,
               compute_dtype=jnp.bfloat16):
    """y = GELU_tanh(x @ W_fc + b_fc) @ W_proj + b_proj.

    x: (B, T, C). Weights stored (in, out) (transposed vs. nn.Linear.weight);
    biases (out,). `tm` = token tile, `th` = hidden tile (both clamped /
    snapped to hardware-friendly sizes). Matmul inputs cast to
    `compute_dtype` (bf16 default for the MXU); accumulation and GELU in f32.
    """
    B, T, C = x.shape
    H = w_fc.shape[1]                       # 4*C
    M = B * T

    # Lane-align channel / hidden dims to 128 so stores are unmasked vst
    # (lane-dense out_spec is the biggest single epilogue lever).
    Cp = _round_up(C, 128)
    Hp = _round_up(H, 128)

    # Token tile: multiple of 8 sublanes, clamped for tiny problems.
    tm = max(8, min(tm, _round_up(M, 8)))
    Mp = _round_up(M, tm)

    # Hidden tile: multiple of 128 that divides Hp (128 always works).
    th = max(128, (min(th, Hp) // 128) * 128)
    while Hp % th != 0:
        th -= 128

    x2 = jnp.pad(x.reshape(M, C),
                 ((0, Mp - M), (0, Cp - C))).astype(compute_dtype)
    wfc = jnp.pad(w_fc, ((0, Cp - C), (0, Hp - H))).astype(compute_dtype)
    wpj = jnp.pad(w_proj, ((0, Hp - H), (0, Cp - C))).astype(compute_dtype)
    bfc2 = jnp.pad(b_fc, (0, Hp - H)).reshape(1, Hp).astype(jnp.float32)
    bpj2 = jnp.pad(b_proj, (0, Cp - C)).reshape(1, Cp).astype(jnp.float32)
    # Zero-padding keeps the math exact: padded hidden columns give
    # GELU(0) = 0 -> no contribution; padded output columns are sliced off.

    out2 = pl.pallas_call(
        mlp_kernel,
        out_shape=jax.ShapeDtypeStruct((Mp, Cp), x.dtype),
        grid_spec=pltpu.PrefetchScalarGridSpec(
            num_scalar_prefetch=0,
            grid=(Mp // tm, Hp // th),            # reduction axis (H) last
            in_specs=[
                pl.BlockSpec((tm, Cp), lambda i, h: (i, 0)),   # x tile (resident over h)
                pl.BlockSpec((Cp, th), lambda i, h: (0, h)),   # W_fc column tile
                pl.BlockSpec((1, th), lambda i, h: (0, h)),    # b_fc tile
                pl.BlockSpec((th, Cp), lambda i, h: (h, 0)),   # W_proj row tile
                pl.BlockSpec((1, Cp), lambda i, h: (0, 0)),    # b_proj (resident)
            ],
            out_specs=pl.BlockSpec((tm, Cp), lambda i, h: (i, 0)),
            scratch_shapes=[pltpu.VMEM((tm, Cp), jnp.float32)],  # c_proj acc
        ),
        compiler_params=pltpu.CompilerParams(
            dimension_semantics=("parallel", "arbitrary"),
            # headroom under v7x's 64 MiB physical VMEM; plenty on v5e/v6e
            vmem_limit_bytes=48 * 1024 * 1024,
        ),
    )(x2, wfc, bfc2, wpj, bpj2)

    return out2[:M, :C].reshape(B, T, C)


def _reference_mlp(x, w_fc, b_fc, w_proj, b_proj):
    h = x @ w_fc + b_fc
    c = math.sqrt(2.0 / math.pi)
    h = 0.5 * h * (1.0 + jnp.tanh(c * (h + 0.044715 * h ** 3)))
    return h @ w_proj + b_proj


if __name__ == "__main__":
    # Small config consistent with the module: n_embd=32, hidden=4*32=128.
    B, T, C = 2, 8, 32
    H = 4 * C

    key = jax.random.PRNGKey(0)
    kx, k1, k2, k3, k4 = jax.random.split(key, 5)

    x = jax.random.normal(kx, (B, T, C), dtype=jnp.float32)

    # Deterministic parameter init (mimics nn.Linear scale, stored as (in, out)).
    w_fc = jax.random.normal(k1, (C, H), dtype=jnp.float32) * (1.0 / math.sqrt(C))
    b_fc = jax.random.normal(k2, (H,), dtype=jnp.float32) * 0.02
    w_proj = jax.random.normal(k3, (H, C), dtype=jnp.float32) * (1.0 / math.sqrt(H))
    b_proj = jax.random.normal(k4, (C,), dtype=jnp.float32) * 0.02

    ref = _reference_mlp(x.reshape(-1, C), w_fc, b_fc,
                         w_proj, b_proj).reshape(B, T, C)

    # f32 compute path: tight check against the f32 reference.
    out_f32 = mlp_pallas(x, w_fc, b_fc, w_proj, b_proj,
                         compute_dtype=jnp.float32)
    out_f32 = jax.block_until_ready(out_f32)
    assert out_f32.shape == (B, T, C)
    assert jnp.allclose(out_f32, ref, atol=1e-4, rtol=1e-4), "f32 mismatch"

    # Default bf16 MXU path (fast path on v6e/v7x): looser tolerance.
    out_bf16 = mlp_pallas(x, w_fc, b_fc, w_proj, b_proj)
    out_bf16 = jax.block_until_ready(out_bf16)
    assert out_bf16.shape == (B, T, C)
    assert jnp.allclose(out_bf16, ref, atol=5e-2, rtol=5e-2), "bf16 mismatch"

    print("KERNEL_OK")
</pallas_src>

<mosaic_0001>
module attributes {stable_mosaic.version = 11 : i64} {
  func.func @mlp_kernel(%arg0: i32, %arg1: i32, %arg2: memref<16x128xf32, #tpu.memory_space<vmem>>, %arg3: memref<128x128xf32, #tpu.memory_space<vmem>>, %arg4: memref<1x128xf32, #tpu.memory_space<vmem>>, %arg5: memref<128x128xf32, #tpu.memory_space<vmem>>, %arg6: memref<1x128xf32, #tpu.memory_space<vmem>>, %arg7: memref<16x128xf32, #tpu.memory_space<vmem>>, %arg8: memref<16x128xf32, #tpu.memory_space<vmem>>) attributes {dimension_semantics = [#tpu.dimension_semantics<parallel>, #tpu.dimension_semantics<arbitrary>], iteration_bounds = array<i64: 1, 1>, scalar_prefetch = 0 : i64, scratch_operands = 1 : i64, tpu.core_type = #tpu.core_type<tc>, window_params = [{transform_indices = @transform_0, window_bounds = array<i64: 16, 128>}, {transform_indices = @transform_1, window_bounds = array<i64: 128, 128>}, {transform_indices = @transform_2, window_bounds = array<i64: 1, 128>}, {transform_indices = @transform_3, window_bounds = array<i64: 128, 128>}, {pipeline_mode = #tpu.pipeline_mode<synchronous>, transform_indices = @transform_4, window_bounds = array<i64: 1, 128>}, {transform_indices = @transform_5, window_bounds = array<i64: 16, 128>}]} {
    %c0_i32 = arith.constant 0 : i32
    %0 = arith.cmpi eq, %arg1, %c0_i32 : i32
    %1 = arith.extui %0 : i1 to i32
    %c0_i32_0 = arith.constant 0 : i32
    %2 = arith.cmpi ne, %1, %c0_i32_0 : i32
    scf.if %2 {
      %c0_19 = arith.constant 0 : index
      %c0_20 = arith.constant 0 : index
      %29 = vector.load %arg6[%c0_19, %c0_20] : memref<1x128xf32, #tpu.memory_space<vmem>>, vector<1x128xf32>
      %30 = vector.shape_cast %29 : vector<1x128xf32> to vector<1x128xf32>
      %31 = vector.broadcast %30 : vector<1x128xf32> to vector<16x128xf32>
      %c0_21 = arith.constant 0 : index
      %c0_22 = arith.constant 0 : index
      %32 = vector.load %arg8[%c0_21, %c0_22] : memref<16x128xf32, #tpu.memory_space<vmem>>, vector<16x128xf32>
      tpu.vector_store %arg8[%c0_21, %c0_22], %31 {strides = array<i32>} : memref<16x128xf32, #tpu.memory_space<vmem>>, vector<16x128xf32>,
    } else {
    }
    %c0 = arith.constant 0 : index
    %c0_1 = arith.constant 0 : index
    %3 = vector.load %arg2[%c0, %c0_1] : memref<16x128xf32, #tpu.memory_space<vmem>>, vector<16x128xf32>
    %c0_2 = arith.constant 0 : index
    %c0_3 = arith.constant 0 : index
    %4 = vector.load %arg3[%c0_2, %c0_3] : memref<128x128xf32, #tpu.memory_space<vmem>>, vector<128x128xf32>
    %cst = arith.constant dense<0.000000e+00> : vector<16x128xf32>
    %5 = tpu.matmul %3, %4, %cst {dimension_numbers = #tpu.dot_dimension_numbers<[1], [0], [0], [1], [0, 0, 1, 1], [], []>} : vector<16x128xf32>, vector<128x128xf32>, vector<16x128xf32> -> vector<16x128xf32>
    %c0_4 = arith.constant 0 : index
    %c0_5 = arith.constant 0 : index
    %6 = vector.load %arg4[%c0_4, %c0_5] : memref<1x128xf32, #tpu.memory_space<vmem>>, vector<1x128xf32>
    %7 = vector.broadcast %6 : vector<1x128xf32> to vector<16x128xf32>
    %8 = arith.addf %5, %7 : vector<16x128xf32>
    %9 = arith.mulf %8, %8 : vector<16x128xf32>
    %cst_6 = arith.constant 0.0356774069 : f32
    %10 = vector.broadcast %cst_6 : f32 to vector<16x128xf32>
    %11 = arith.mulf %10, %9 : vector<16x128xf32>
    %cst_7 = arith.constant 0.797884583 : f32
    %12 = vector.broadcast %cst_7 : f32 to vector<16x128xf32>
    %13 = arith.addf %12, %11 : vector<16x128xf32>
    %14 = arith.mulf %8, %13 : vector<16x128xf32>
    %cst_8 = arith.constant 5.000000e-01 : f32
    %15 = vector.broadcast %cst_8 : f32 to vector<16x128xf32>
    %16 = arith.mulf %15, %8 : vector<16x128xf32>
    %17 = math.tanh %14 : vector<16x128xf32>
    %cst_9 = arith.constant 1.000000e+00 : f32
    %18 = vector.broadcast %cst_9 : f32 to vector<16x128xf32>
    %19 = arith.addf %18, %17 : vector<16x128xf32>
    %20 = arith.mulf %16, %19 : vector<16x128xf32>
    %c0_10 = arith.constant 0 : index
    %c0_11 = arith.constant 0 : index
    %21 = vector.load %arg8[%c0_10, %c0_11] : memref<16x128xf32, #tpu.memory_space<vmem>>, vector<16x128xf32>
    %c0_12 = arith.constant 0 : index
    %c0_13 = arith.constant 0 : index
    %22 = vector.load %arg5[%c0_12, %c0_13] : memref<128x128xf32, #tpu.memory_space<vmem>>, vector<128x128xf32>
    %cst_14 = arith.constant dense<0.000000e+00> : vector<16x128xf32>
    %23 = tpu.matmul %20, %22, %cst_14 {dimension_numbers = #tpu.dot_dimension_numbers<[1], [0], [0], [1], [0, 0, 1, 1], [], []>} : vector<16x128xf32>, vector<128x128xf32>, vector<16x128xf32> -> vector<16x128xf32>
    %24 = arith.addf %21, %23 : vector<16x128xf32>
    %c0_15 = arith.constant 0 : index
    %c0_16 = arith.constant 0 : index
    %25 = vector.load %arg8[%c0_15, %c0_16] : memref<16x128xf32, #tpu.memory_space<vmem>>, vector<16x128xf32>
    tpu.vector_store %arg8[%c0_15, %c0_16], %24 {strides = array<i32>} : memref<16x128xf32, #tpu.memory_space<vmem>>, vector<16x128xf32>,
    %c0_i32_17 = arith.constant 0 : i32
    %26 = arith.cmpi eq, %arg1, %c0_i32_17 : i32
    %27 = arith.extui %26 : i1 to i32
    %c0_i32_18 = arith.constant 0 : i32
    %28 = arith.cmpi ne, %27, %c0_i32_18 : i32
    scf.if %28 {
      %c0_19 = arith.constant 0 : index
      %c0_20 = arith.constant 0 : index
      %29 = vector.load %arg8[%c0_19, %c0_20] : memref<16x128xf32, #tpu.memory_space<vmem>>, vector<16x128xf32>
      %c0_21 = arith.constant 0 : index
      %c0_22 = arith.constant 0 : index
      %30 = vector.load %arg7[%c0_21, %c0_22] : memref<16x128xf32, #tpu.memory_space<vmem>>, vector<16x128xf32>
      tpu.vector_store %arg7[%c0_21, %c0_22], %29 {strides = array<i32>} : memref<16x128xf32, #tpu.memory_space<vmem>>, vector<16x128xf32>,
    } else {
    }
    return
  }
  func.func @transform_0(%arg0: i32, %arg1: i32) -> (i32, i32) {
    %c0_i32 = arith.constant 0 : i32
    %c0_i32_0 = arith.constant 0 : i32
    return %arg0, %c0_i32 : i32, i32
  }
  func.func @transform_1(%arg0: i32, %arg1: i32) -> (i32, i32) {
    %c0_i32 = arith.constant 0 : i32
    %c0_i32_0 = arith.constant 0 : i32
    return %c0_i32, %arg1 : i32, i32
  }
  func.func @transform_2(%arg0: i32, %arg1: i32) -> (i32, i32) {
    %c0_i32 = arith.constant 0 : i32
    %c0_i32_0 = arith.constant 0 : i32
    return %c0_i32, %arg1 : i32, i32
  }
  func.func @transform_3(%arg0: i32, %arg1: i32) -> (i32, i32) {
    %c0_i32 = arith.constant 0 : i32
    %c0_i32_0 = arith.constant 0 : i32
    return %arg1, %c0_i32 : i32, i32
  }
  func.func @transform_4(%arg0: i32, %arg1: i32) -> (i32, i32) {
    %c0_i32 = arith.constant 0 : i32
    %c0_i32_0 = arith.constant 0 : i32
    %c0_i32_1 = arith.constant 0 : i32
    return %c0_i32, %c0_i32_0 : i32, i32
  }
  func.func @transform_5(%arg0: i32, %arg1: i32) -> (i32, i32) {
    %c0_i32 = arith.constant 0 : i32
    %c0_i32_0 = arith.constant 0 : i32
    return %arg0, %c0_i32 : i32, i32
  }
}

</mosaic_0001>

<llo_original>
// kernel: mlp_pallas.1
$region0: #{mlp_pallas.1}
  #allocation0 [shape = 'u32[]', space=smem, size = 0x4, offset = 0x4, fixed_abs, tag = 'smem constant byte address 0x4 - core index']
  #allocation1 [shape = 'u32[144,128]{1,0:T(1,128)}', space=vmem, size = 0x12000, scoped, tag = 'internal scratch']
  #allocation2 [shape = 'f32[16,128]{1,0:T(8,128)}', space=vmem, size = 0x2000, scoped, tag = 'scratch operand']
  %s0 = inlined_call_operand.vmem [shape: f32[16,128], index: 0, kind: input, shape index: {}]
  %s1 = inlined_call_operand.vmem [shape: f32[128,128], index: 1, kind: input, shape index: {}]
  %s2 = inlined_call_operand.vmem [shape: f32[1,128], index: 2, kind: input, shape index: {}]
  %s3 = inlined_call_operand.vmem [shape: f32[128,128], index: 3, kind: input, shape index: {}]
  %s4 = inlined_call_operand.vmem [shape: f32[1,128], index: 4, kind: input, shape index: {}]
  %s5 = inlined_call_operand.vmem [shape: f32[16,128], index: 5, kind: output, shape index: {}]
  %s6 = sld [smem:[#allocation0]]
  $region38: #{mlp_pallas.1} parent=0
    _
  %s8 = ssub.s32 1, %s6
  %s9 = scalar_select 0, %s8, %s6
  // Predicated region
  $region2: #{mlp_pallas.1} parent=0 // pred_check
    _
  $region3: #{mlp_pallas.1} parent=0 // pred_check_branch
    %11 = sbr.rel (0) target = $region5
  $region4: #{mlp_pallas.1} parent=0 // pred_region
    _
  $region5: #{mlp_pallas.1} parent=0 // pred_fallthru
    _
  // Predicated region
  $region6: #{mlp_pallas.1} parent=0 // pred_check
    _
  $region7: #{mlp_pallas.1} parent=0 // pred_check_branch
    %13 = sbr.rel (0) target = $region9
  $region8: #{mlp_pallas.1} parent=0 // pred_region
    _
  $region9: #{mlp_pallas.1} parent=0 // pred_fallthru
    _
  // Predicated region
  $region10: #{mlp_pallas.1} parent=0 // pred_check
    _
  $region11: #{mlp_pallas.1} parent=0 // pred_check_branch
    %15 = sbr.rel (0) target = $region13
  $region12: #{mlp_pallas.1} parent=0 // pred_region
    _
  $region13: #{mlp_pallas.1} parent=0 // pred_fallthru
    _
  // Predicated region
  $region14: #{mlp_pallas.1} parent=0 // pred_check
    _
  $region15: #{mlp_pallas.1} parent=0 // pred_check_branch
    %17 = sbr.rel (0) target = $region17
  $region16: #{mlp_pallas.1} parent=0 // pred_region
    _
  $region17: #{mlp_pallas.1} parent=0 // pred_fallthru
    _
  // Predicated region
  $region18: #{mlp_pallas.1} parent=0 // pred_check
    _
  $region19: #{mlp_pallas.1} parent=0 // pred_check_branch
    %19 = sbr.rel (0) target = $region21
  $region20: #{mlp_pallas.1} parent=0 // pred_region
    _
  $region21: #{mlp_pallas.1} parent=0 // pred_fallthru
    _
  %p20 = scmp.eq.s32.totalorder 0, 0
  // Predicated region
  $region22: #{mlp_pallas.1} parent=0 // pred_check
    %p21 = pneg %p20
  $region23: #{mlp_pallas.1} parent=0 // pred_check_branch
    %23 = sbr.rel (%p21) target = $region25
  $region24: #{mlp_pallas.1} parent=0 // pred_region
    %v24 = vld [vmem:[%s4] sm:$0x1]
    %v26 = vlaneseq
    %v27 = vshrl.u32 %v26, 7
    %v28 = vsub.s32 0, %v27
    %v29 = vrot.slane %v24, %v28
    %31 = vst [vmem:[#allocation2] sm:$0xff] %v29
    %32 = vst [vmem:[#allocation2 + $0x8] sm:$0xff] %v29
  $region25: #{mlp_pallas.1} parent=0 // pred_fallthru
    _
  %v33 = vld [vmem:[%s0] sm:$0xff]
  %v34 = vld [vmem:[%s0 + $0x8] sm:$0xff]
  %v35 = vld [vmem:[%s1] sm:$0xff]
  %v36 = vld [vmem:[%s1 + $0x8] sm:$0xff]
  %v37 = vld [vmem:[%s1 + $0x10] sm:$0xff]
  %v38 = vld [vmem:[%s1 + $0x18] sm:$0xff]
  %v39 = vld [vmem:[%s1 + $0x20] sm:$0xff]
  %v40 = vld [vmem:[%s1 + $0x28] sm:$0xff]
  %v41 = vld [vmem:[%s1 + $0x30] sm:$0xff]
  %v42 = vld [vmem:[%s1 + $0x38] sm:$0xff]
  %v43 = vld [vmem:[%s1 + $0x40] sm:$0xff]
  %v44 = vld [vmem:[%s1 + $0x48] sm:$0xff]
  %v45 = vld [vmem:[%s1 + $0x50] sm:$0xff]
  %v46 = vld [vmem:[%s1 + $0x58] sm:$0xff]
  %v47 = vld [vmem:[%s1 + $0x60] sm:$0xff]
  %v48 = vld [vmem:[%s1 + $0x68] sm:$0xff]
  %v49 = vld [vmem:[%s1 + $0x70] sm:$0xff]
  %v50 = vld [vmem:[%s1 + $0x78] sm:$0xff]
  %v51 = vld [vmem:[%s2] sm:$0x1]
  %v53 = vlaneseq
  %v54 = vshrl.u32 %v53, 7
  %v55 = vsub.s32 0, %v54
  %v56 = vrot.slane %v51, %v55
  %58 = vmatprep.subr.mxu0 0.0
  %59 = vmatpush1.msra.mxu0 %v50
  %60 = vmatprep.subr.mxu0 0.0
  %61 = vmatpush1.msra.mxu0 %v49
  %62 = vmatprep.subr.mxu0 0.0
  %63 = vmatpush1.msra.mxu0 %v48
  %64 = vmatprep.subr.mxu0 0.0
  %65 = vmatpush1.msra.mxu0 %v47
  %66 = vmatprep.subr.mxu0 0.0
  %67 = vmatpush1.msra.mxu0 %v46
  %68 = vmatprep.subr.mxu0 0.0
  %69 = vmatpush1.msra.mxu0 %v45
  %70 = vmatprep.subr.mxu0 0.0
  %71 = vmatpush1.msra.mxu0 %v44
  %72 = vmatprep.subr.mxu0 0.0
  %73 = vmatpush1.msra.mxu0 %v43
  %74 = vmatprep.subr.mxu0 0.0
  %75 = vmatpush1.msra.mxu0 %v42
  %76 = vmatprep.subr.mxu0 0.0
  %77 = vmatpush1.msra.mxu0 %v41
  %78 = vmatprep.subr.mxu0 0.0
  %79 = vmatpush1.msra.mxu0 %v40
  %80 = vmatprep.subr.mxu0 0.0
  %81 = vmatpush1.msra.mxu0 %v39
  %82 = vmatprep.subr.mxu0 0.0
  %83 = vmatpush1.msra.mxu0 %v38
  %84 = vmatprep.subr.mxu0 0.0
  %85 = vmatpush1.msra.mxu0 %v37
  %86 = vmatprep.subr.mxu0 0.0
  %87 = vmatpush1.msra.mxu0 %v36
  %88 = vmatprep.subr.mxu0 0.0
  %89 = vmatpush1.msra.mxu0 %v35
  %90 = vmatprep.subr.mxu0 0.0
  %91 = vmatpush2.msra.mxu0 0.0
  %92 = vmatprep.subr.mxu0 0.0
  %93 = vmatpush2.msra.mxu0 0.0
  %94 = vmatprep.subr.mxu0 0.0
  %95 = vmatpush2.msra.mxu0 0.0
  %96 = vmatprep.subr.mxu0 0.0
  %97 = vmatpush2.msra.mxu0 0.0
  %98 = vmatprep.subr.mxu0 0.0
  %99 = vmatpush2.msra.mxu0 0.0
  %100 = vmatprep.subr.mxu0 0.0
  %101 = vmatpush2.msra.mxu0 0.0
  %102 = vmatprep.subr.mxu0 0.0
  %103 = vmatpush2.msra.mxu0 0.0
  %104 = vmatprep.subr.mxu0 0.0
  %105 = vmatpush2.msra.mxu0 0.0
  %106 = vmatprep.subr.mxu0 0.0
  %107 = vmatpush2.msra.mxu0 0.0
  %108 = vmatprep.subr.mxu0 0.0
  %109 = vmatpush2.msra.mxu0 0.0
  %110 = vmatprep.subr.mxu0 0.0
  %111 = vmatpush2.msra.mxu0 0.0
  %112 = vmatprep.subr.mxu0 0.0
  %113 = vmatpush2.msra.mxu0 0.0
  %114 = vmatprep.subr.mxu0 0.0
  %115 = vmatpush2.msra.mxu0 0.0
  %116 = vmatprep.subr.mxu0 0.0
  %117 = vmatpush2.msra.mxu0 0.0
  %118 = vmatprep.subr.mxu0 0.0
  %119 = vmatpush2.msra.mxu0 0.0
  %120 = vmatprep.subr.mxu0 0.0
  %121 = vmatpush2.msra.mxu0 0.0
  %122 = vmatprep.mubr.f32.mxu0 0.0
  %123 = vmatmul.mubr.f32.gmra.mxu0 %v33
  %v124 = vpop.f32.mrf.mxu0
  %v125 = vadd.f32 %v56, %v124
  %v126 = vpop.f32.mrf.mxu0
  %127 = vmatprep.mubr.f32.mxu0 0.0
  %128 = vmatmul.mubr.f32.gmra.mxu0 %v34
  %v129 = vpop.f32.mrf.mxu0
  %v130 = vadd.f32 %v56, %v129
  %v131 = vpop.f32.mrf.mxu0
  %132 = vdwg.mxu0
  %v133 = vmul.f32 %v125, %v125
  %v134 = vmul.f32 %v130, %v130
  %v135 = vmul.f32 %v133, 0.035677407
  %v136 = vmul.f32 %v134, 0.035677407
  %v137 = vadd.f32 %v135, 0.7978846
  %v138 = vadd.f32 %v136, 0.7978846
  %v139 = vmul.f32 %v125, %v137
  %v140 = vmul.f32 %v130, %v138
  %v141 = vmul.f32 %v125, 0.5
  %v142 = vmul.f32 %v130, 0.5
  %v143 = vtanh.pop %v139
  %v144 = vtanh.pop %v140
  %v145 = vadd.f32 %v143, 1.0
  %v146 = vadd.f32 %v144, 1.0
  %v147 = vmul.f32 %v141, %v145
  %v148 = vmul.f32 %v142, %v146
  %v149 = vld [vmem:[#allocation2] sm:$0xff]
  %v150 = vld [vmem:[#allocation2 + $0x8] sm:$0xff]
  %v151 = vld [vmem:[%s3] sm:$0xff]
  %v152 = vld [vmem:[%s3 + $0x8] sm:$0xff]
  %v153 = vld [vmem:[%s3 + $0x10] sm:$0xff]
  %v154 = vld [vmem:[%s3 + $0x18] sm:$0xff]
  %v155 = vld [vmem:[%s3 + $0x20] sm:$0xff]
  %v156 = vld [vmem:[%s3 + $0x28] sm:$0xff]
  %v157 = vld [vmem:[%s3 + $0x30] sm:$0xff]
  %v158 = vld [vmem:[%s3 + $0x38] sm:$0xff]
  %v159 = vld [vmem:[%s3 + $0x40] sm:$0xff]
  %v160 = vld [vmem:[%s3 + $0x48] sm:$0xff]
  %v161 = vld [vmem:[%s3 + $0x50] sm:$0xff]
  %v162 = vld [vmem:[%s3 + $0x58] sm:$0xff]
  %v163 = vld [vmem:[%s3 + $0x60] sm:$0xff]
  %v164 = vld [vmem:[%s3 + $0x68] sm:$0xff]
  %v165 = vld [vmem:[%s3 + $0x70] sm:$0xff]
  %v166 = vld [vmem:[%s3 + $0x78] sm:$0xff]
  %167 = vmatprep.subr.mxu0 0.0
  %168 = vmatpush1.msra.mxu0 %v166
  %169 = vmatprep.subr.mxu0 0.0
  %170 = vmatpush1.msra.mxu0 %v165
  %171 = vmatprep.subr.mxu0 0.0
  %172 = vmatpush1.msra.mxu0 %v164
  %173 = vmatprep.subr.mxu0 0.0
  %174 = vmatpush1.msra.mxu0 %v163
  %175 = vmatprep.subr.mxu0 0.0
  %176 = vmatpush1.msra.mxu0 %v162
  %177 = vmatprep.subr.mxu0 0.0
  %178 = vmatpush1.msra.mxu0 %v161
  %179 = vmatprep.subr.mxu0 0.0
  %180 = vmatpush1.msra.mxu0 %v160
  %181 = vmatprep.subr.mxu0 0.0
  %182 = vmatpush1.msra.mxu0 %v159
  %183 = vmatprep.subr.mxu0 0.0
  %184 = vmatpush1.msra.mxu0 %v158
  %185 = vmatprep.subr.mxu0 0.0
  %186 = vmatpush1.msra.mxu0 %v157
  %187 = vmatprep.subr.mxu0 0.0
  %188 = vmatpush1.msra.mxu0 %v156
  %189 = vmatprep.subr.mxu0 0.0
  %190 = vmatpush1.msra.mxu0 %v155
  %191 = vmatprep.subr.mxu0 0.0
  %192 = vmatpush1.msra.mxu0 %v154
  %193 = vmatprep.subr.mxu0 0.0
  %194 = vmatpush1.msra.mxu0 %v153
  %195 = vmatprep.subr.mxu0 0.0
  %196 = vmatpush1.msra.mxu0 %v152
  %197 = vmatprep.subr.mxu0 0.0
  %198 = vmatpush1.msra.mxu0 %v151
  %199 = vmatprep.subr.mxu0 0.0
  %200 = vmatpush2.msra.mxu0 0.0
  %201 = vmatprep.subr.mxu0 0.0
  %202 = vmatpush2.msra.mxu0 0.0
  %203 = vmatprep.subr.mxu0 0.0
  %204 = vmatpush2.msra.mxu0 0.0
  %205 = vmatprep.subr.mxu0 0.0
  %206 = vmatpush2.msra.mxu0 0.0
  %207 = vmatprep.subr.mxu0 0.0
  %208 = vmatpush2.msra.mxu0 0.0
  %209 = vmatprep.subr.mxu0 0.0
  %210 = vmatpush2.msra.mxu0 0.0
  %211 = vmatprep.subr.mxu0 0.0
  %212 = vmatpush2.msra.mxu0 0.0
  %213 = vmatprep.subr.mxu0 0.0
  %214 = vmatpush2.msra.mxu0 0.0
  %215 = vmatprep.subr.mxu0 0.0
  %216 = vmatpush2.msra.mxu0 0.0
  %217 = vmatprep.subr.mxu0 0.0
  %218 = vmatpush2.msra.mxu0 0.0
  %219 = vmatprep.subr.mxu0 0.0
  %220 = vmatpush2.msra.mxu0 0.0
  %221 = vmatprep.subr.mxu0 0.0
  %222 = vmatpush2.msra.mxu0 0.0
  %223 = vmatprep.subr.mxu0 0.0
  %224 = vmatpush2.msra.mxu0 0.0
  %225 = vmatprep.subr.mxu0 0.0
  %226 = vmatpush2.msra.mxu0 0.0
  %227 = vmatprep.subr.mxu0 0.0
  %228 = vmatpush2.msra.mxu0 0.0
  %229 = vmatprep.subr.mxu0 0.0
  %230 = vmatpush2.msra.mxu0 0.0
  %231 = vmatprep.mubr.f32.mxu0 0.0
  %232 = vmatmul.mubr.f32.gmra.mxu0 %v147
  %v233 = vpop.f32.mrf.mxu0
  %v234 = vadd.f32 0.0, %v233
  %v235 = vpop.f32.mrf.mxu0
  %236 = vmatprep.mubr.f32.mxu0 0.0
  %237 = vmatmul.mubr.f32.gmra.mxu0 %v148
  %v238 = vpop.f32.mrf.mxu0
  %v239 = vadd.f32 0.0, %v238
  %v240 = vpop.f32.mrf.mxu0
  %241 = vdwg.mxu0
  %v242 = vadd.f32 %v149, %v234
  %v243 = vadd.f32 %v150, %v239
  %244 = vst [vmem:[#allocation2] sm:$0xff] %v242
  %245 = vst [vmem:[#allocation2 + $0x8] sm:$0xff] %v243
  // Predicated region
  $region26: #{mlp_pallas.1} parent=0 // pred_check
    %p246 = pneg %p20
  $region27: #{mlp_pallas.1} parent=0 // pred_check_branch
    %248 = sbr.rel (%p246) target = $region29
  $region28: #{mlp_pallas.1} parent=0 // pred_region
    %v249 = vld [vmem:[#allocation2] sm:$0xff]
    %v250 = vld [vmem:[#allocation2 + $0x8] sm:$0xff]
    %251 = vst [vmem:[%s5] sm:$0xff] %v249
    %252 = vst [vmem:[%s5 + $0x8] sm:$0xff] %v250
  $region29: #{mlp_pallas.1} parent=0 // pred_fallthru
    _
  // Predicated region
  $region30: #{mlp_pallas.1} parent=0 // pred_check
    _
  $region31: #{mlp_pallas.1} parent=0 // pred_check_branch
    %254 = sbr.rel (0) target = $region33
  $region32: #{mlp_pallas.1} parent=0 // pred_region
    _
  $region33: #{mlp_pallas.1} parent=0 // pred_fallthru
    _
  // Predicated region
  $region34: #{mlp_pallas.1} parent=0 // pred_check
    _
  $region35: #{mlp_pallas.1} parent=0 // pred_check_branch
    %256 = sbr.rel (0) target = $region37
  $region36: #{mlp_pallas.1} parent=0 // pred_region
    _
  $region37: #{mlp_pallas.1} parent=0 // pred_fallthru
    _

</llo_original>
